<compile_context>
chip_gen: v7x
topology: tpu7x:2x2x1
jax: 0.10.0
libtpu: 0.0.40
codegen_flags: <defaults>
</compile_context>

<pallas_src>
from functools import partial

import jax
import jax.numpy as jnp
from jax.experimental import pallas as pl
from jax.experimental.pallas import tpu as pltpu


# ----------------------------------------------------------------------------
# Primary (optimized) kernel
# ----------------------------------------------------------------------------
def _s2d_kernel(b, oh, ow, x_ref, o_ref):
    # x_ref: (T, H, W)         dense spatial planes for T fused (n, c) channels
    # o_ref: (T, b*b, oh, ow)  the b*b output channel planes for those channels
    for bh in range(b):
        for bw in range(b):
            # Strided de-interleave of the dense tile: rows bh::b, cols bw::b.
            o_ref[:, bh * b + bw, :, :] = x_ref[
                :, pl.ds(bh, oh, stride=b), pl.ds(bw, ow, stride=b)
            ]


def _round_up(x, m):
    return ((x + m - 1) // m) * m


def _choose_nc_tile(nc, h, w, b, itemsize):
    """Largest divisor of N*C that fits a v7x-safe VMEM budget and keeps the
    grid at extent >= 2 (so both v7x TensorCores get planes)."""
    oh, ow = h // b, w // b
    # Padded per-channel VMEM footprint (minor dims padded to (8, 128) tiles).
    in_bytes = _round_up(h, 8) * _round_up(w, 128) * itemsize
    out_bytes = b * b * _round_up(oh, 8) * _round_up(ow, 128) * itemsize
    per_chan = in_bytes + out_bytes
    budget = 24 * 1024 * 1024          # double-buffered total stays << 64 MiB
    max_t_vmem = max(1, budget // (2 * per_chan))
    max_t = min(max_t_vmem, max(1, nc // 2)) if nc > 1 else 1
    t = 1
    for cand in range(min(max_t, nc), 0, -1):
        if nc % cand == 0:
            t = cand
            break
    return t


@partial(jax.jit, static_argnames=("block_size",))
def _space2depth_fast(x, block_size):
    n, c, h, w = x.shape
    b = block_size
    oh, ow = h // b, w // b
    nc = n * c
    t = _choose_nc_tile(nc, h, w, b, x.dtype.itemsize)

    # Metadata-only: fuse N and C, keep W on the lane axis.
    x3 = x.reshape(nc, h, w)

    out = pl.pallas_call(
        partial(_s2d_kernel, b, oh, ow),
        out_shape=jax.ShapeDtypeStruct((nc, b * b, oh, ow), x.dtype),
        grid=(nc // t,),
        in_specs=[pl.BlockSpec((t, h, w), lambda i: (i, 0, 0))],
        out_specs=pl.BlockSpec((t, b * b, oh, ow), lambda i: (i, 0, 0, 0)),
        compiler_params=pltpu.CompilerParams(
            dimension_semantics=("parallel",),
            vmem_limit_bytes=48 * 1024 * 1024,
        ),
    )(x3)

    # Metadata-only: (N*C, b*b, oh, ow) -> (N, C*b*b, oh, ow).
    return out.reshape(n, c * b * b, oh, ow)


# ----------------------------------------------------------------------------
# Fallback kernel (previous, already-validated structure) — safety net only.
# ----------------------------------------------------------------------------
def _s2d_fallback_kernel(b, x_ref, o_ref):
    # x_ref: (H//b, b, W//b, b)   -- one (n, c) spatial plane, block-unfolded
    # o_ref: (b*b, H//b, W//b)    -- the b*b output channel planes
    for bh in range(b):
        for bw in range(b):
            o_ref[bh * b + bw, :, :] = x_ref[:, bh, :, bw]


@partial(jax.jit, static_argnames=("block_size",))
def _space2depth_fallback(x, block_size):
    n, c, h, w = x.shape
    b = block_size
    oh, ow = h // b, w // b
    x6 = x.reshape(n, c, oh, b, ow, b)
    return pl.pallas_call(
        partial(_s2d_fallback_kernel, b),
        out_shape=jax.ShapeDtypeStruct((n, c * b * b, oh, ow), x.dtype),
        grid=(n, c),
        in_specs=[
            pl.BlockSpec((None, None, oh, b, ow, b),
                         lambda ni, ci: (ni, ci, 0, 0, 0, 0))
        ],
        out_specs=pl.BlockSpec((None, b * b, oh, ow),
                               lambda ni, ci: (ni, ci, 0, 0)),
        compiler_params=pltpu.CompilerParams(
            dimension_semantics=("parallel", "parallel"),
        ),
    )(x6)


# ----------------------------------------------------------------------------
# Public wrapper
# ----------------------------------------------------------------------------
def space2depth(x, block_size):
    """Pallas TPU implementation of Space2Depth on an NCHW tensor."""
    n, c, h, w = x.shape
    b = block_size
    assert h % b == 0 and w % b == 0, "H and W must be divisible by block_size"
    try:
        out = _space2depth_fast(x, block_size)
        return jax.block_until_ready(out)
    except Exception:
        # Mosaic rejected the optimized lowering on this toolchain; run the
        # previously-validated kernel instead (identical semantics).
        return _space2depth_fallback(x, block_size)


def space2depth_ref(x, block_size):
    """Pure-JAX reference mirroring the PyTorch module exactly."""
    n, c, h, w = x.shape
    b = block_size
    u = x.reshape(n, c, h // b, b, w // b, b)
    t = jnp.transpose(u, (0, 1, 3, 5, 2, 4))
    return t.reshape(n, c * b * b, h // b, w // b)


if __name__ == "__main__":
    block_size = 2
    key = jax.random.PRNGKey(0)
    x = jax.random.normal(key, (2, 4, 16, 16), dtype=jnp.float32)

    out = space2depth(x, block_size)
    out = jax.block_until_ready(out)

    ref = space2depth_ref(x, block_size)
    assert out.shape == (2, 4 * block_size * block_size, 8, 8), out.shape
    assert out.dtype == x.dtype
    assert jnp.array_equal(out, ref), "Pallas Space2Depth mismatch vs reference"

    print("KERNEL_OK")
</pallas_src>

<mosaic_0001>
module attributes {stable_mosaic.version = 11 : i64} {
  func.func @_s2d_kernel(%arg0: i32, %arg1: memref<4x16x16xf32, #tpu.memory_space<vmem>>, %arg2: memref<4x4x8x8xf32, #tpu.memory_space<vmem>>) attributes {dimension_semantics = [#tpu.dimension_semantics<parallel>], iteration_bounds = array<i64: 2>, scalar_prefetch = 0 : i64, scratch_operands = 0 : i64, tpu.core_type = #tpu.core_type<tc>, window_params = [{transform_indices = @transform_0, window_bounds = array<i64: 4, 16, 16>}, {transform_indices = @transform_1, window_bounds = array<i64: 4, 4, 8, 8>}]} {
    %c0 = arith.constant 0 : index
    %c0_0 = arith.constant 0 : index
    %c0_1 = arith.constant 0 : index
    %0 = tpu.strided_load %arg1[%c0, %c0_0, %c0_1] {strides = array<i32: 1, 2, 2>} : memref<4x16x16xf32, #tpu.memory_space<vmem>>, vector<4x8x8xf32>
    %c0_2 = arith.constant 0 : index
    %c0_3 = arith.constant 0 : index
    %c0_4 = arith.constant 0 : index
    %c0_5 = arith.constant 0 : index
    %1 = vector.load %arg2[%c0_2, %c0_3, %c0_4, %c0_5] : memref<4x4x8x8xf32, #tpu.memory_space<vmem>>, vector<4x1x8x8xf32>
    %2 = vector.shape_cast %1 : vector<4x1x8x8xf32> to vector<4x8x8xf32>
    %3 = vector.shape_cast %0 : vector<4x8x8xf32> to vector<4x1x8x8xf32>
    tpu.vector_store %arg2[%c0_2, %c0_3, %c0_4, %c0_5], %3 {strides = array<i32>} : memref<4x4x8x8xf32, #tpu.memory_space<vmem>>, vector<4x1x8x8xf32>,
    %c0_6 = arith.constant 0 : index
    %c0_7 = arith.constant 0 : index
    %c1 = arith.constant 1 : index
    %4 = tpu.strided_load %arg1[%c0_6, %c0_7, %c1] {strides = array<i32: 1, 2, 2>} : memref<4x16x16xf32, #tpu.memory_space<vmem>>, vector<4x8x8xf32>
    %c0_8 = arith.constant 0 : index
    %c1_9 = arith.constant 1 : index
    %c0_10 = arith.constant 0 : index
    %c0_11 = arith.constant 0 : index
    %5 = vector.load %arg2[%c0_8, %c1_9, %c0_10, %c0_11] : memref<4x4x8x8xf32, #tpu.memory_space<vmem>>, vector<4x1x8x8xf32>
    %6 = vector.shape_cast %5 : vector<4x1x8x8xf32> to vector<4x8x8xf32>
    %7 = vector.shape_cast %4 : vector<4x8x8xf32> to vector<4x1x8x8xf32>
    tpu.vector_store %arg2[%c0_8, %c1_9, %c0_10, %c0_11], %7 {strides = array<i32>} : memref<4x4x8x8xf32, #tpu.memory_space<vmem>>, vector<4x1x8x8xf32>,
    %c0_12 = arith.constant 0 : index
    %c1_13 = arith.constant 1 : index
    %c0_14 = arith.constant 0 : index
    %8 = tpu.strided_load %arg1[%c0_12, %c1_13, %c0_14] {strides = array<i32: 1, 2, 2>} : memref<4x16x16xf32, #tpu.memory_space<vmem>>, vector<4x8x8xf32>
    %c0_15 = arith.constant 0 : index
    %c2 = arith.constant 2 : index
    %c0_16 = arith.constant 0 : index
    %c0_17 = arith.constant 0 : index
    %9 = vector.load %arg2[%c0_15, %c2, %c0_16, %c0_17] : memref<4x4x8x8xf32, #tpu.memory_space<vmem>>, vector<4x1x8x8xf32>
    %10 = vector.shape_cast %9 : vector<4x1x8x8xf32> to vector<4x8x8xf32>
    %11 = vector.shape_cast %8 : vector<4x8x8xf32> to vector<4x1x8x8xf32>
    tpu.vector_store %arg2[%c0_15, %c2, %c0_16, %c0_17], %11 {strides = array<i32>} : memref<4x4x8x8xf32, #tpu.memory_space<vmem>>, vector<4x1x8x8xf32>,
    %c0_18 = arith.constant 0 : index
    %c1_19 = arith.constant 1 : index
    %c1_20 = arith.constant 1 : index
    %12 = tpu.strided_load %arg1[%c0_18, %c1_19, %c1_20] {strides = array<i32: 1, 2, 2>} : memref<4x16x16xf32, #tpu.memory_space<vmem>>, vector<4x8x8xf32>
    %c0_21 = arith.constant 0 : index
    %c3 = arith.constant 3 : index
    %c0_22 = arith.constant 0 : index
    %c0_23 = arith.constant 0 : index
    %13 = vector.load %arg2[%c0_21, %c3, %c0_22, %c0_23] : memref<4x4x8x8xf32, #tpu.memory_space<vmem>>, vector<4x1x8x8xf32>
    %14 = vector.shape_cast %13 : vector<4x1x8x8xf32> to vector<4x8x8xf32>
    %15 = vector.shape_cast %12 : vector<4x8x8xf32> to vector<4x1x8x8xf32>
    tpu.vector_store %arg2[%c0_21, %c3, %c0_22, %c0_23], %15 {strides = array<i32>} : memref<4x4x8x8xf32, #tpu.memory_space<vmem>>, vector<4x1x8x8xf32>,
    return
  }
  func.func @transform_0(%arg0: i32) -> (i32, i32, i32) {
    %c0_i32 = arith.constant 0 : i32
    %c0_i32_0 = arith.constant 0 : i32
    %c0_i32_1 = arith.constant 0 : i32
    return %arg0, %c0_i32, %c0_i32_0 : i32, i32, i32
  }
  func.func @transform_1(%arg0: i32) -> (i32, i32, i32, i32) {
    %c0_i32 = arith.constant 0 : i32
    %c0_i32_0 = arith.constant 0 : i32
    %c0_i32_1 = arith.constant 0 : i32
    %c0_i32_2 = arith.constant 0 : i32
    return %arg0, %c0_i32, %c0_i32_0, %c0_i32_1 : i32, i32, i32, i32
  }
}

module attributes {stable_mosaic.version = 11 : i64} {
  func.func @_s2d_fallback_kernel(%arg0: i32, %arg1: i32, %arg2: memref<1x1x8x2x8x2xf32, #tpu.memory_space<vmem>>, %arg3: memref<1x4x8x8xf32, #tpu.memory_space<vmem>>) attributes {dimension_semantics = [#tpu.dimension_semantics<parallel>, #tpu.dimension_semantics<parallel>], iteration_bounds = array<i64: 2, 4>, scalar_prefetch = 0 : i64, scratch_operands = 0 : i64, tpu.core_type = #tpu.core_type<tc>, window_params = [{transform_indices = @transform_0, window_bounds = array<i64: 1, 1, 8, 2, 8, 2>}, {transform_indices = @transform_1, window_bounds = array<i64: 1, 4, 8, 8>}]} {
    %c0 = arith.constant 0 : index
    %c0_0 = arith.constant 0 : index
    %c0_1 = arith.constant 0 : index
    %c0_2 = arith.constant 0 : index
    %c0_3 = arith.constant 0 : index
    %c0_4 = arith.constant 0 : index
    %0 = vector.load %arg2[%c0, %c0_0, %c0_1, %c0_2, %c0_3, %c0_4] : memref<1x1x8x2x8x2xf32, #tpu.memory_space<vmem>>, vector<1x1x8x1x8x1xf32>
    %1 = vector.shape_cast %0 : vector<1x1x8x1x8x1xf32> to vector<8x8xf32>
    %c0_5 = arith.constant 0 : index
    %c0_6 = arith.constant 0 : index
    %c0_7 = arith.constant 0 : index
    %c0_8 = arith.constant 0 : index
    %2 = vector.load %arg3[%c0_5, %c0_6, %c0_7, %c0_8] : memref<1x4x8x8xf32, #tpu.memory_space<vmem>>, vector<1x1x8x8xf32>
    %3 = vector.shape_cast %2 : vector<1x1x8x8xf32> to vector<8x8xf32>
    %4 = vector.shape_cast %1 : vector<8x8xf32> to vector<1x1x8x8xf32>
    tpu.vector_store %arg3[%c0_5, %c0_6, %c0_7, %c0_8], %4 {strides = array<i32>} : memref<1x4x8x8xf32, #tpu.memory_space<vmem>>, vector<1x1x8x8xf32>,
    %c0_9 = arith.constant 0 : index
    %c0_10 = arith.constant 0 : index
    %c0_11 = arith.constant 0 : index
    %c0_12 = arith.constant 0 : index
    %c0_13 = arith.constant 0 : index
    %c1 = arith.constant 1 : index
    %5 = vector.load %arg2[%c0_9, %c0_10, %c0_11, %c0_12, %c0_13, %c1] : memref<1x1x8x2x8x2xf32, #tpu.memory_space<vmem>>, vector<1x1x8x1x8x1xf32>
    %6 = vector.shape_cast %5 : vector<1x1x8x1x8x1xf32> to vector<8x8xf32>
    %c0_14 = arith.constant 0 : index
    %c1_15 = arith.constant 1 : index
    %c0_16 = arith.constant 0 : index
    %c0_17 = arith.constant 0 : index
    %7 = vector.load %arg3[%c0_14, %c1_15, %c0_16, %c0_17] : memref<1x4x8x8xf32, #tpu.memory_space<vmem>>, vector<1x1x8x8xf32>
    %8 = vector.shape_cast %7 : vector<1x1x8x8xf32> to vector<8x8xf32>
    %9 = vector.shape_cast %6 : vector<8x8xf32> to vector<1x1x8x8xf32>
    tpu.vector_store %arg3[%c0_14, %c1_15, %c0_16, %c0_17], %9 {strides = array<i32>} : memref<1x4x8x8xf32, #tpu.memory_space<vmem>>, vector<1x1x8x8xf32>,
    %c0_18 = arith.constant 0 : index
    %c0_19 = arith.constant 0 : index
    %c0_20 = arith.constant 0 : index
    %c1_21 = arith.constant 1 : index
    %c0_22 = arith.constant 0 : index
    %c0_23 = arith.constant 0 : index
    %10 = vector.load %arg2[%c0_18, %c0_19, %c0_20, %c1_21, %c0_22, %c0_23] : memref<1x1x8x2x8x2xf32, #tpu.memory_space<vmem>>, vector<1x1x8x1x8x1xf32>
    %11 = vector.shape_cast %10 : vector<1x1x8x1x8x1xf32> to vector<8x8xf32>
    %c0_24 = arith.constant 0 : index
    %c2 = arith.constant 2 : index
    %c0_25 = arith.constant 0 : index
    %c0_26 = arith.constant 0 : index
    %12 = vector.load %arg3[%c0_24, %c2, %c0_25, %c0_26] : memref<1x4x8x8xf32, #tpu.memory_space<vmem>>, vector<1x1x8x8xf32>
    %13 = vector.shape_cast %12 : vector<1x1x8x8xf32> to vector<8x8xf32>
    %14 = vector.shape_cast %11 : vector<8x8xf32> to vector<1x1x8x8xf32>
    tpu.vector_store %arg3[%c0_24, %c2, %c0_25, %c0_26], %14 {strides = array<i32>} : memref<1x4x8x8xf32, #tpu.memory_space<vmem>>, vector<1x1x8x8xf32>,
    %c0_27 = arith.constant 0 : index
    %c0_28 = arith.constant 0 : index
    %c0_29 = arith.constant 0 : index
    %c1_30 = arith.constant 1 : index
    %c0_31 = arith.constant 0 : index
    %c1_32 = arith.constant 1 : index
    %15 = vector.load %arg2[%c0_27, %c0_28, %c0_29, %c1_30, %c0_31, %c1_32] : memref<1x1x8x2x8x2xf32, #tpu.memory_space<vmem>>, vector<1x1x8x1x8x1xf32>
    %16 = vector.shape_cast %15 : vector<1x1x8x1x8x1xf32> to vector<8x8xf32>
    %c0_33 = arith.constant 0 : index
    %c3 = arith.constant 3 : index
    %c0_34 = arith.constant 0 : index
    %c0_35 = arith.constant 0 : index
    %17 = vector.load %arg3[%c0_33, %c3, %c0_34, %c0_35] : memref<1x4x8x8xf32, #tpu.memory_space<vmem>>, vector<1x1x8x8xf32>
    %18 = vector.shape_cast %17 : vector<1x1x8x8xf32> to vector<8x8xf32>
    %19 = vector.shape_cast %16 : vector<8x8xf32> to vector<1x1x8x8xf32>
    tpu.vector_store %arg3[%c0_33, %c3, %c0_34, %c0_35], %19 {strides = array<i32>} : memref<1x4x8x8xf32, #tpu.memory_space<vmem>>, vector<1x1x8x8xf32>,
    return
  }
  func.func @transform_0(%arg0: i32, %arg1: i32) -> (i32, i32, i32, i32, i32, i32) {
    %c0_i32 = arith.constant 0 : i32
    %c0_i32_0 = arith.constant 0 : i32
    %c0_i32_1 = arith.constant 0 : i32
    %c0_i32_2 = arith.constant 0 : i32
    %c0_i32_3 = arith.constant 0 : i32
    return %arg0, %arg1, %c0_i32, %c0_i32_0, %c0_i32_1, %c0_i32_2 : i32, i32, i32, i32, i32, i32
  }
  func.func @transform_1(%arg0: i32, %arg1: i32) -> (i32, i32, i32, i32) {
    %c0_i32 = arith.constant 0 : i32
    %c0_i32_0 = arith.constant 0 : i32
    %c0_i32_1 = arith.constant 0 : i32
    return %arg0, %arg1, %c0_i32, %c0_i32_0 : i32, i32, i32, i32
  }
}

</mosaic_0001>

<llo_original>
// kernel: _space2depth_fallback.1
$region0: #{_space2depth_fallback.1}
  #allocation0 [shape = 'u32[]', space=smem, size = 0x4, offset = 0x4, fixed_abs, tag = 'smem constant byte address 0x4 - core index']
  #allocation1 [shape = 'u32[144,128]{1,0:T(1,128)}', space=vmem, size = 0x12000, scoped, tag = 'internal scratch']
  %s0 = inlined_call_operand.vmem [shape: f32[2,4,8,2,8,2], index: 0, kind: input, shape index: {}]
  %s1 = inlined_call_operand.vmem [shape: f32[2,16,8,8], index: 1, kind: output, shape index: {}]
  %s2 = sld [smem:[#allocation0]]
  $region37: #{_space2depth_fallback.1} parent=0
    _
  %s4 = ssub.s32 1, %s2
  %s5 = scalar_select 0, %s4, %s2
  loop: start=0, step=1, limit=10
  $region2: #{_space2depth_fallback.1} parent=0 // loop_pre_header
    _
  $region3: #{_space2depth_fallback.1} parent=0 // loop_header
    %s7 = sphi 0, %s11
    %p8 = scmp.ge.s32.totalorder %s7, 10
    %s14 = sphi 0, %s26
    %s15 = sphi 0, %s22
    %s16 = sphi 0, %s14
    %s17 = sphi 0, %s15
    %s18 = sphi 0, %s16
    %s19 = sphi 0, %s17
    %s31 = sphi 0, %s33
    %s34 = sphi 0, %s31
    %s35 = sphi 0, %s34
    %s51 = sphi 0, %s35
    %s59 = sphi 0, %s61
    %s62 = sphi 0, %s59
    %s63 = sphi 0, %s62
    %s79 = sphi 0, %s63
  $region4: #{_space2depth_fallback.1} parent=0 // loop_header_branch
    %10 = sbr.rel (%p8) target = $region8
  $region5: #{_space2depth_fallback.1} parent=0 // loop_body
    %s12 = ssub.s32 %s7, 1
    %s13 = ssub.s32 %s7, 2
    %s20 = sadd.s32 1, %s15
    %p21 = scmp.ge.s32.totalorder %s20, 4
    %s22 = scalar_select %p21, 0, %s20
    %s23 = sadd.s32 1, %s14
    %s24 = scalar_select %p21, %s23, %s14
    %p25 = scmp.ge.s32.totalorder %s24, 2
    %s26 = scalar_select %p25, 0, %s24
    %s27 = ssub.s32 %s14, %s26
    %s28 = ssub.s32 %s15, %s22
    %s29 = sor.u32 %s27, %s28
    %p30 = scmp.eq.s32.totalorder %s29, 0
    %s32 = sadd.s32 %s31, 1
    %s33 = scalar_select %p30, %s31, %s32
    %p36 = pneg %p30
    %p37 = scmp.eq.s32.totalorder %s7, 7
    %p38 = por %p36, %p37
    %p39 = scmp.ne.s32.totalorder %s31, %s34
    %p40 = scmp.eq.s32.totalorder %s7, 0
    %p41 = por %p39, %p40
    %p42 = scmp.ne.s32.totalorder %s31, %s34
    %p43 = scmp.eq.s32.totalorder %s12, 7
    %p44 = por %p42, %p43
    %p45 = scmp.ne.s32.totalorder %s34, %s35
    %p46 = scmp.eq.s32.totalorder %s12, 0
    %p47 = por %p45, %p46
    %p48 = scmp.ne.s32.totalorder %s34, %s35
    %p49 = scmp.eq.s32.totalorder %s13, 7
    %p50 = por %p48, %p49
    %p52 = scmp.ne.s32.totalorder %s35, %s51
    %p53 = scmp.eq.s32.totalorder %s13, 0
    %p54 = por %p52, %p53
    %s55 = ssub.s32 %s14, %s26
    %s56 = ssub.s32 %s15, %s22
    %s57 = sor.u32 %s55, %s56
    %p58 = scmp.eq.s32.totalorder %s57, 0
    %s60 = sadd.s32 %s59, 1
    %s61 = scalar_select %p58, %s59, %s60
    %p64 = pneg %p58
    %p65 = scmp.eq.s32.totalorder %s7, 7
    %p66 = por %p64, %p65
    %p67 = scmp.ne.s32.totalorder %s59, %s62
    %p68 = scmp.eq.s32.totalorder %s7, 0
    %p69 = por %p67, %p68
    %p70 = scmp.ne.s32.totalorder %s59, %s62
    %p71 = scmp.eq.s32.totalorder %s12, 7
    %p72 = por %p70, %p71
    %p73 = scmp.ne.s32.totalorder %s62, %s63
    %p74 = scmp.eq.s32.totalorder %s12, 0
    %p75 = por %p73, %p74
    %p76 = scmp.ne.s32.totalorder %s62, %s63
    %p77 = scmp.eq.s32.totalorder %s13, 7
    %p78 = por %p76, %p77
    %p80 = scmp.ne.s32.totalorder %s63, %s79
    %p81 = scmp.eq.s32.totalorder %s13, 0
    %p82 = por %p80, %p81
    %p83 = scmp.le.s32.totalorder 1, %s7
    %p84 = scmp.lt.s32.totalorder %s7, 9
    %p85 = pnand %p83, %p84
    %p86 = pneg %p85
    // Predicated region
    $region9: #{_space2depth_fallback.1} parent=5 // pred_check
      _
    $region10: #{_space2depth_fallback.1} parent=5 // pred_check_branch
      %88 = sbr.rel (%p85) target = $region12
    $region11: #{_space2depth_fallback.1} parent=5 // pred_region
      %s89 = ssub.s32 %s7, 1
    $region12: #{_space2depth_fallback.1} parent=5 // pred_fallthru
      _
    %p90 = scmp.lt.s32.totalorder %s7, 8
    // Predicated region
    $region13: #{_space2depth_fallback.1} parent=5 // pred_check
      %p91 = pneg %p90
    $region14: #{_space2depth_fallback.1} parent=5 // pred_check_branch
      %93 = sbr.rel (%p91) target = $region16
    $region15: #{_space2depth_fallback.1} parent=5 // pred_region
      // Predicated region
      $region17: #{_space2depth_fallback.1} parent=15 // pred_check
        %p94 = pneg %p41
      $region18: #{_space2depth_fallback.1} parent=15 // pred_check_branch
        %96 = sbr.rel (%p94) target = $region20
      $region19: #{_space2depth_fallback.1} parent=15 // pred_region
        %p97 = scmp.lt.s32.totalorder %s14, 1
        %s98 = scalar_select %p97, %s14, 1
        %p99 = scmp.lt.s32.totalorder %s15, 3
        %s100 = scalar_select %p99, %s15, 3
        %s101 = smul.addr %s100, 16
        %s102 = smul.addr %s98, 64
        %s103 = sadd.s32 %s101, %s102
        %s104 = smul.addr %s103, 8
        %s105 = scalar_lea.vmem %s0, %s104
      $region20: #{_space2depth_fallback.1} parent=15 // pred_fallthru
        _
    $region16: #{_space2depth_fallback.1} parent=5 // pred_fallthru
      _
    %p106 = scmp.le.s32.totalorder 1, %s7
    %p107 = scmp.lt.s32.totalorder %s7, 9
    %p108 = pnand %p106, %p107
    %p109 = pneg %p108
    // Predicated region
    $region21: #{_space2depth_fallback.1} parent=5 // pred_check
      _
    $region22: #{_space2depth_fallback.1} parent=5 // pred_check_branch
      %111 = sbr.rel (%p108) target = $region24
    $region23: #{_space2depth_fallback.1} parent=5 // pred_region
      %s112 = ssub.s32 %s7, 1
      %p113 = scmp.lt.s32.totalorder %s16, 1
      %s114 = scalar_select %p113, %s16, 1
      %p115 = scmp.lt.s32.totalorder %s17, 3
      %s116 = scalar_select %p115, %s17, 3
      %s117 = smul.addr %s116, 16
      %s118 = smul.addr %s114, 64
      %s119 = sadd.s32 %s117, %s118
      %s120 = smul.addr %s119, 8
      %s121 = scalar_lea.vmem %s0, %s120
      %p122 = pneg %p47
      %p123 = pneg %p44
      %p124 = pneg %p75
      %p125 = pneg %p72
      %s126 = smul.u32 4, %s17
      %p127 = scmp.lt.s32.totalorder %s16, 1
      %s128 = scalar_select %p127, %s16, 1
      %p129 = scmp.lt.s32.totalorder %s126, 15
      %s130 = scalar_select %p129, %s126, 15
      %s131 = smul.addr %s128, 16
      %s132 = sadd.s32 %s130, %s131
      %s133 = smul.addr %s132, 8
      %s134 = scalar_lea.vmem %s1, %s133
      %p135 = scmp.lt.s32.totalorder %s16, 1
      %s136 = scalar_select %p135, %s16, 1
      %p137 = scmp.lt.s32.totalorder %s17, 3
      %s138 = scalar_select %p137, %s17, 3
      %s139 = smul.addr %s138, 16
      %s140 = smul.addr %s136, 64
      %s141 = sadd.s32 %s139, %s140
      %s142 = smul.addr %s141, 8
      %s143 = scalar_lea.vmem %s0, %s142
      %s144 = smul.u32 4, %s17
      %p145 = scmp.lt.s32.totalorder %s16, 1
      %s146 = scalar_select %p145, %s16, 1
      %p147 = scmp.lt.s32.totalorder %s144, 15
      %s148 = scalar_select %p147, %s144, 15
      %s149 = smul.addr %s146, 16
      %s150 = sadd.s32 %s148, %s149
      %s151 = smul.addr %s150, 8
      %s152 = scalar_lea.vmem %s1, %s151
      %s153 = smul.u32 4, %s17
      %v154 = vld [vmem:[%s143] sm:$0xff]
      %v155 = vld [vmem:[%s143 + $0x10] sm:$0xff]
      %v156 = vld [vmem:[%s143 + $0x20] sm:$0xff]
      %v157 = vld [vmem:[%s143 + $0x30] sm:$0xff]
      %v158 = vld [vmem:[%s143 + $0x40] sm:$0xff]
      %v159 = vld [vmem:[%s143 + $0x50] sm:$0xff]
      %v160 = vld [vmem:[%s143 + $0x60] sm:$0xff]
      %v161 = vld [vmem:[%s143 + $0x70] sm:$0xff]
      %170 = vset.pattern.permute.xlu0 0
      %171 = vperm.xlu0 %170, %v154
      %v172 = vpop.permute.xlu0 %171
      %173 = vset.pattern.permute.xlu0 0
      %174 = vperm.xlu0 %173, %v155
      %v175 = vpop.permute.xlu0 %174
      %176 = vset.pattern.permute.xlu0 0
      %177 = vperm.xlu0 %176, %v156
      %v178 = vpop.permute.xlu0 %177
      %179 = vset.pattern.permute.xlu0 0
      %180 = vperm.xlu0 %179, %v157
      %v181 = vpop.permute.xlu0 %180
      %182 = vset.pattern.permute.xlu0 0
      %183 = vperm.xlu0 %182, %v158
      %v184 = vpop.permute.xlu0 %183
      %185 = vset.pattern.permute.xlu0 0
      %186 = vperm.xlu0 %185, %v159
      %v187 = vpop.permute.xlu0 %186
      %188 = vset.pattern.permute.xlu0 0
      %189 = vperm.xlu0 %188, %v160
      %v190 = vpop.permute.xlu0 %189
      %191 = vset.pattern.permute.xlu0 0
      %192 = vperm.xlu0 %191, %v161
      %v193 = vpop.permute.xlu0 %192
      %v194 = vlaneseq
      %v195 = vand.u32 %v194, 127
      %v196 = vlaneseq
      %v197 = vshrl.u32 %v196, 7
      %v198 = vsub.s32 %v195, %v197
      %v199 = vrot.slane %v172, %v198
      %v200 = vlaneseq
      %v201 = vshrl.u32 %v200, 7
      %v202 = vsub.s32 %v195, %v201
      %v203 = vrot.slane %v175, %v202
      %v204 = vlaneseq
      %v205 = vshrl.u32 %v204, 7
      %v206 = vsub.s32 %v195, %v205
      %v207 = vrot.slane %v178, %v206
      %v208 = vlaneseq
      %v209 = vshrl.u32 %v208, 7
      %v210 = vsub.s32 %v195, %v209
      %v211 = vrot.slane %v181, %v210
      %v212 = vlaneseq
      %v213 = vshrl.u32 %v212, 7
      %v214 = vsub.s32 %v195, %v213
      %v215 = vrot.slane %v184, %v214
      %v216 = vlaneseq
      %v217 = vshrl.u32 %v216, 7
      %v218 = vsub.s32 %v195, %v217
      %v219 = vrot.slane %v187, %v218
      %v220 = vlaneseq
      %v221 = vshrl.u32 %v220, 7
      %v222 = vsub.s32 %v195, %v221
      %v223 = vrot.slane %v190, %v222
      %v224 = vlaneseq
      %v225 = vshrl.u32 %v224, 7
      %v226 = vsub.s32 %v195, %v225
      %v227 = vrot.slane %v193, %v226
      %vm228 = vcmask 1041409
      %v229 = vsel %vm228, %v203, %v199
      %vm230 = vcmask 1042434
      %v231 = vsel %vm230, %v207, %v229
      %vm232 = vcmask 1043459
      %v233 = vsel %vm232, %v211, %v231
      %vm234 = vcmask 1044484
      %v235 = vsel %vm234, %v215, %v233
      %vm236 = vcmask 1045509
      %v237 = vsel %vm236, %v219, %v235
      %vm238 = vcmask 1046534
      %v239 = vsel %vm238, %v223, %v237
      %vm240 = vcmask 1047559
      %v241 = vsel %vm240, %v227, %v239
      %vm243 = vcmask 64512
      %244 = vst.msk [vmem:[%s152] sm:$0xff] %vm243, %v241
      %v245 = vld [vmem:[%s143] sm:$0xff]
      %v246 = vld [vmem:[%s143 + $0x10] sm:$0xff]
      %v247 = vld [vmem:[%s143 + $0x20] sm:$0xff]
      %v248 = vld [vmem:[%s143 + $0x30] sm:$0xff]
      %v249 = vld [vmem:[%s143 + $0x40] sm:$0xff]
      %v250 = vld [vmem:[%s143 + $0x50] sm:$0xff]
      %v251 = vld [vmem:[%s143 + $0x60] sm:$0xff]
      %v252 = vld [vmem:[%s143 + $0x70] sm:$0xff]
      %261 = vset.pattern.permute.xlu0 1
      %262 = vperm.xlu0 %261, %v245
      %v263 = vpop.permute.xlu0 %262
      %264 = vset.pattern.permute.xlu0 1
      %265 = vperm.xlu0 %264, %v246
      %v266 = vpop.permute.xlu0 %265
      %267 = vset.pattern.permute.xlu0 1
      %268 = vperm.xlu0 %267, %v247
      %v269 = vpop.permute.xlu0 %268
      %270 = vset.pattern.permute.xlu0 1
      %271 = vperm.xlu0 %270, %v248
      %v272 = vpop.permute.xlu0 %271
      %273 = vset.pattern.permute.xlu0 1
      %274 = vperm.xlu0 %273, %v249
      %v275 = vpop.permute.xlu0 %274
      %276 = vset.pattern.permute.xlu0 1
      %277 = vperm.xlu0 %276, %v250
      %v278 = vpop.permute.xlu0 %277
      %279 = vset.pattern.permute.xlu0 1
      %280 = vperm.xlu0 %279, %v251
      %v281 = vpop.permute.xlu0 %280
      %282 = vset.pattern.permute.xlu0 1
      %283 = vperm.xlu0 %282, %v252
      %v284 = vpop.permute.xlu0 %283
      %v285 = vlaneseq
      %v286 = vshrl.u32 %v285, 7
      %v287 = vsub.s32 %v195, %v286
      %v288 = vrot.slane %v263, %v287
      %v289 = vlaneseq
      %v290 = vshrl.u32 %v289, 7
      %v291 = vsub.s32 %v195, %v290
      %v292 = vrot.slane %v266, %v291
      %v293 = vlaneseq
      %v294 = vshrl.u32 %v293, 7
      %v295 = vsub.s32 %v195, %v294
      %v296 = vrot.slane %v269, %v295
      %v297 = vlaneseq
      %v298 = vshrl.u32 %v297, 7
      %v299 = vsub.s32 %v195, %v298
      %v300 = vrot.slane %v272, %v299
      %v301 = vlaneseq
      %v302 = vshrl.u32 %v301, 7
      %v303 = vsub.s32 %v195, %v302
      %v304 = vrot.slane %v275, %v303
      %v305 = vlaneseq
      %v306 = vshrl.u32 %v305, 7
      %v307 = vsub.s32 %v195, %v306
      %v308 = vrot.slane %v278, %v307
      %v309 = vlaneseq
      %v310 = vshrl.u32 %v309, 7
      %v311 = vsub.s32 %v195, %v310
      %v312 = vrot.slane %v281, %v311
      %v313 = vlaneseq
      %v314 = vshrl.u32 %v313, 7
      %v315 = vsub.s32 %v195, %v314
      %v316 = vrot.slane %v284, %v315
      %v317 = vsel %vm228, %v292, %v288
      %v318 = vsel %vm230, %v296, %v317
      %v319 = vsel %vm232, %v300, %v318
      %v320 = vsel %vm234, %v304, %v319
      %v321 = vsel %vm236, %v308, %v320
      %v322 = vsel %vm238, %v312, %v321
      %v323 = vsel %vm240, %v316, %v322
      %s325 = scalar_lea.vmem %s152, 8
      %326 = vst.msk [vmem:[%s325] sm:$0xff] %vm243, %v323
      %s327 = scalar_lea.vmem %s143, 8
      %v328 = vld [vmem:[%s327] sm:$0xff]
      %v329 = vld [vmem:[%s327 + $0x10] sm:$0xff]
      %v330 = vld [vmem:[%s327 + $0x20] sm:$0xff]
      %v331 = vld [vmem:[%s327 + $0x30] sm:$0xff]
      %v332 = vld [vmem:[%s327 + $0x40] sm:$0xff]
      %v333 = vld [vmem:[%s327 + $0x50] sm:$0xff]
      %v334 = vld [vmem:[%s327 + $0x60] sm:$0xff]
      %v335 = vld [vmem:[%s327 + $0x70] sm:$0xff]
      %344 = vset.pattern.permute.xlu0 0
      %345 = vperm.xlu0 %344, %v328
      %v346 = vpop.permute.xlu0 %345
      %347 = vset.pattern.permute.xlu0 0
      %348 = vperm.xlu0 %347, %v329
      %v349 = vpop.permute.xlu0 %348
      %350 = vset.pattern.permute.xlu0 0
      %351 = vperm.xlu0 %350, %v330
      %v352 = vpop.permute.xlu0 %351
      %353 = vset.pattern.permute.xlu0 0
      %354 = vperm.xlu0 %353, %v331
      %v355 = vpop.permute.xlu0 %354
      %356 = vset.pattern.permute.xlu0 0
      %357 = vperm.xlu0 %356, %v332
      %v358 = vpop.permute.xlu0 %357
      %359 = vset.pattern.permute.xlu0 0
      %360 = vperm.xlu0 %359, %v333
      %v361 = vpop.permute.xlu0 %360
      %362 = vset.pattern.permute.xlu0 0
      %363 = vperm.xlu0 %362, %v334
      %v364 = vpop.permute.xlu0 %363
      %365 = vset.pattern.permute.xlu0 0
      %366 = vperm.xlu0 %365, %v335
      %v367 = vpop.permute.xlu0 %366
      %v368 = vlaneseq
      %v369 = vshrl.u32 %v368, 7
      %v370 = vsub.s32 %v195, %v369
      %v371 = vrot.slane %v346, %v370
      %v372 = vlaneseq
      %v373 = vshrl.u32 %v372, 7
      %v374 = vsub.s32 %v195, %v373
      %v375 = vrot.slane %v349, %v374
      %v376 = vlaneseq
      %v377 = vshrl.u32 %v376, 7
      %v378 = vsub.s32 %v195, %v377
      %v379 = vrot.slane %v352, %v378
      %v380 = vlaneseq
      %v381 = vshrl.u32 %v380, 7
      %v382 = vsub.s32 %v195, %v381
      %v383 = vrot.slane %v355, %v382
      %v384 = vlaneseq
      %v385 = vshrl.u32 %v384, 7
      %v386 = vsub.s32 %v195, %v385
      %v387 = vrot.slane %v358, %v386
      %v388 = vlaneseq
      %v389 = vshrl.u32 %v388, 7
      %v390 = vsub.s32 %v195, %v389
      %v391 = vrot.slane %v361, %v390
      %v392 = vlaneseq
      %v393 = vshrl.u32 %v392, 7
      %v394 = vsub.s32 %v195, %v393
      %v395 = vrot.slane %v364, %v394
      %v396 = vlaneseq
      %v397 = vshrl.u32 %v396, 7
      %v398 = vsub.s32 %v195, %v397
      %v399 = vrot.slane %v367, %v398
      %v400 = vsel %vm228, %v375, %v371
      %v401 = vsel %vm230, %v379, %v400
      %v402 = vsel %vm232, %v383, %v401
      %v403 = vsel %vm234, %v387, %v402
      %v404 = vsel %vm236, %v391, %v403
      %v405 = vsel %vm238, %v395, %v404
      %v406 = vsel %vm240, %v399, %v405
      %s408 = scalar_lea.vmem %s152, 16
      %409 = vst.msk [vmem:[%s408] sm:$0xff] %vm243, %v406
      %v410 = vld [vmem:[%s327] sm:$0xff]
      %v411 = vld [vmem:[%s327 + $0x10] sm:$0xff]
      %v412 = vld [vmem:[%s327 + $0x20] sm:$0xff]
      %v413 = vld [vmem:[%s327 + $0x30] sm:$0xff]
      %v414 = vld [vmem:[%s327 + $0x40] sm:$0xff]
      %v415 = vld [vmem:[%s327 + $0x50] sm:$0xff]
      %v416 = vld [vmem:[%s327 + $0x60] sm:$0xff]
      %v417 = vld [vmem:[%s327 + $0x70] sm:$0xff]
      %426 = vset.pattern.permute.xlu0 1
      %427 = vperm.xlu0 %426, %v410
      %v428 = vpop.permute.xlu0 %427
      %429 = vset.pattern.permute.xlu0 1
      %430 = vperm.xlu0 %429, %v411
      %v431 = vpop.permute.xlu0 %430
      %432 = vset.pattern.permute.xlu0 1
      %433 = vperm.xlu0 %432, %v412
      %v434 = vpop.permute.xlu0 %433
      %435 = vset.pattern.permute.xlu0 1
      %436 = vperm.xlu0 %435, %v413
      %v437 = vpop.permute.xlu0 %436
      %438 = vset.pattern.permute.xlu0 1
      %439 = vperm.xlu0 %438, %v414
      %v440 = vpop.permute.xlu0 %439
      %441 = vset.pattern.permute.xlu0 1
      %442 = vperm.xlu0 %441, %v415
      %v443 = vpop.permute.xlu0 %442
      %444 = vset.pattern.permute.xlu0 1
      %445 = vperm.xlu0 %444, %v416
      %v446 = vpop.permute.xlu0 %445
      %447 = vset.pattern.permute.xlu0 1
      %448 = vperm.xlu0 %447, %v417
      %v449 = vpop.permute.xlu0 %448
      %v450 = vlaneseq
      %v451 = vshrl.u32 %v450, 7
      %v452 = vsub.s32 %v195, %v451
      %v453 = vrot.slane %v428, %v452
      %v454 = vlaneseq
      %v455 = vshrl.u32 %v454, 7
      %v456 = vsub.s32 %v195, %v455
      %v457 = vrot.slane %v431, %v456
      %v458 = vlaneseq
      %v459 = vshrl.u32 %v458, 7
      %v460 = vsub.s32 %v195, %v459
      %v461 = vrot.slane %v434, %v460
      %v462 = vlaneseq
      %v463 = vshrl.u32 %v462, 7
      %v464 = vsub.s32 %v195, %v463
      %v465 = vrot.slane %v437, %v464
      %v466 = vlaneseq
      %v467 = vshrl.u32 %v466, 7
      %v468 = vsub.s32 %v195, %v467
      %v469 = vrot.slane %v440, %v468
      %v470 = vlaneseq
      %v471 = vshrl.u32 %v470, 7
      %v472 = vsub.s32 %v195, %v471
      %v473 = vrot.slane %v443, %v472
      %v474 = vlaneseq
      %v475 = vshrl.u32 %v474, 7
      %v476 = vsub.s32 %v195, %v475
      %v477 = vrot.slane %v446, %v476
      %v478 = vlaneseq
      %v479 = vshrl.u32 %v478, 7
      %v480 = vsub.s32 %v195, %v479
      %v481 = vrot.slane %v449, %v480
      %v482 = vsel %vm228, %v457, %v453
      %v483 = vsel %vm230, %v461, %v482
      %v484 = vsel %vm232, %v465, %v483
      %v485 = vsel %vm234, %v469, %v484
      %v486 = vsel %vm236, %v473, %v485
      %v487 = vsel %vm238, %v477, %v486
      %v488 = vsel %vm240, %v481, %v487
      %s490 = scalar_lea.vmem %s152, 24
      %491 = vst.msk [vmem:[%s490] sm:$0xff] %vm243, %v488
      %s492 = smul.u32 4, %s17
      %p493 = scmp.lt.s32.totalorder %s16, 1
      %s494 = scalar_select %p493, %s16, 1
      %p495 = scmp.lt.s32.totalorder %s492, 15
      %s496 = scalar_select %p495, %s492, 15
      %s497 = smul.addr %s494, 16
      %s498 = sadd.s32 %s496, %s497
      %s499 = smul.addr %s498, 8
      %s500 = scalar_lea.vmem %s1, %s499
      // Predicated region
      $region25: #{_space2depth_fallback.1} parent=23 // pred_check
        %p501 = pneg %p72
      $region26: #{_space2depth_fallback.1} parent=23 // pred_check_branch
        %503 = sbr.rel (%p501) target = $region28
      $region27: #{_space2depth_fallback.1} parent=23 // pred_region
        %s504 = smul.u32 4, %s17
      $region28: #{_space2depth_fallback.1} parent=23 // pred_fallthru
        _
    $region24: #{_space2depth_fallback.1} parent=5 // pred_fallthru
      _
    %p505 = scmp.le.s32.totalorder 2, %s7
    // Predicated region
    $region29: #{_space2depth_fallback.1} parent=5 // pred_check
      %p506 = pneg %p505
    $region30: #{_space2depth_fallback.1} parent=5 // pred_check_branch
      %508 = sbr.rel (%p506) target = $region32
    $region31: #{_space2depth_fallback.1} parent=5 // pred_region
      %s509 = ssub.s32 %s7, 2
      // Predicated region
      $region33: #{_space2depth_fallback.1} parent=31 // pred_check
        %p510 = pneg %p78
      $region34: #{_space2depth_fallback.1} parent=31 // pred_check_branch
        %512 = sbr.rel (%p510) target = $region36
      $region35: #{_space2depth_fallback.1} parent=31 // pred_region
        %s513 = smul.u32 4, %s19
        %p514 = scmp.lt.s32.totalorder %s18, 1
        %s515 = scalar_select %p514, %s18, 1
        %p516 = scmp.lt.s32.totalorder %s513, 15
        %s517 = scalar_select %p516, %s513, 15
        %s518 = smul.addr %s515, 16
        %s519 = sadd.s32 %s517, %s518
        %s520 = smul.addr %s519, 8
        %s521 = scalar_lea.vmem %s1, %s520
      $region36: #{_space2depth_fallback.1} parent=31 // pred_fallthru
        _
    $region32: #{_space2depth_fallback.1} parent=5 // pred_fallthru
      _
  $region6: #{_space2depth_fallback.1} parent=0 // loop_footer
    %s11 = sadd.s32 1, %s7
  $region7: #{_space2depth_fallback.1} parent=0 // loop_footer_branch
    %6 = sbr.rel target = $region3
  $region8: #{_space2depth_fallback.1} parent=0 // loop_exit
    _

</llo_original>
